<compile_context>
chip_gen: v7x
topology: tpu7x:2x2x1
jax: 0.10.0
libtpu: 0.0.40
codegen_flags: <defaults>
</compile_context>

<pallas_src>
import jax
import jax.numpy as jnp
from jax.experimental import pallas as pl
from jax.experimental.pallas import tpu as pltpu


_KH = _KW = 3      # 3x3 convolution
_SUBLANE = 8       # sublane granularity
_LANE = 128        # lane granularity


def _round_up(v, m):
    return (v + m - 1) // m * m


def _choose_batch_block(n, c_pad, c_out, slab, trail, k_pack,
                        vmem_budget=12 * 1024 * 1024, max_images=16):
    """Images per grid step.

    Amortizes per-grid-step overhead while (a) keeping >= 2 grid steps so a
    dual-TensorCore chip (v7x) can shard the "parallel" batch axis across both
    cores, and (b) keeping double-buffered blocks + the tap-stacked scratch
    well under the scoped-VMEM limit (budget is conservative for v7x's 64 MiB
    part as well as v5e/v6e's 128 MiB).
    """
    if n <= 1:
        return 1
    best = 1
    for d in range(1, min(n, max_images) + 1):
        if n % d != 0:
            continue
        if d != 1 and n // d < 2:      # keep both TensorCores busy on v7x
            continue
        l_out = d * slab
        l_in = l_out + trail
        bytes_est = (2 * c_pad * l_in * 2      # double-buffered bf16 input block
                     + 2 * c_out * l_out * 4   # double-buffered f32 output block
                     + k_pack * l_out * 2)     # tap-stacked bf16 VMEM scratch
        if bytes_est <= vmem_budget:
            best = d
    return best


def _make_conv3x3_relu_kernel(tap_starts, c_pad, c_out, l_out):
    """Fused-K 3x3 conv + bias + ReLU over one block of lane-concatenated images.

    Refs (one grid step == B_blk images concatenated along lanes):
      x_ref:     (1, C_pad, L_in)   bf16  channel-padded slabs + trailing zeros
      w_ref:     (C_out, 9*C_pad)   bf16  pre-packed filter (constant block)
      b_ref:     (C_out, 1)         f32   bias (constant block)
      o_ref:     (1, C_out, L_out)  f32   lane-dense output (128-multiple lanes)
      stack_ref: (9*C_pad, L_out)   bf16  tap-stacked RHS scratch
    """

    def kernel(x_ref, w_ref, b_ref, o_ref, stack_ref):
        # Build the tap-stacked RHS once per grid step with nine statically
        # shifted lane-window copies (no materialized im2col; the shifts live
        # outside the matmul accumulate path).
        for t, start in enumerate(tap_starts):
            stack_ref[t * c_pad:(t + 1) * c_pad, :] = (
                x_ref[0, :, start:start + l_out])
        # Single fused-K MXU matmul: (C_out, 9*C_pad) @ (9*C_pad, L), f32 acc.
        acc = jnp.dot(w_ref[...], stack_ref[...],
                      preferred_element_type=jnp.float32)
        # Bias + ReLU once in f32; L_out is a 128 multiple -> unmasked stores,
        # and the f32 dtype keeps the 8-channel store on a native (8,128) tile.
        o_ref[0] = jnp.maximum(acc + b_ref[...], 0.0).astype(o_ref.dtype)

    return kernel


@jax.jit
def conv3x3_relu_pallas(x, weight, bias):
    """Conv2d(3x3, stride 1, pad 1) + ReLU; NCHW in, NCHW out (float32)."""
    n, c_in, h, w = x.shape
    c_out = weight.shape[0]
    assert weight.shape == (c_out, c_in, _KH, _KW)
    assert bias.shape == (c_out,)

    compute_dtype = jnp.bfloat16            # bf16 on the wire, f32 accumulation

    c_pad = _round_up(c_in, _SUBLANE)       # pad channels to a sublane multiple
    hp, wp = h + 2, w + 2                   # spatial zero padding (conv pad=1)
    p = hp * wp                             # flattened padded spatial
    halo = wp + 1                           # max tap lane offset is 2*halo
    slab = _round_up(p + 2 * halo, _LANE)   # per-image lane slab (128 multiple)
    trail = _round_up(2 * halo, _LANE)      # trailing zeros so tap slices fit
    k_pack = _KH * _KW * c_pad              # fused contraction depth (72)

    b_blk = _choose_batch_block(n, c_pad, c_out, slab, trail, k_pack)
    g = n // b_blk                          # grid length (>=2 whenever n>=2)
    l_out = b_blk * slab
    l_in = l_out + trail

    # ---- wrapper-side layout prep (one fused XLA pass) ----------------------
    # TODO(synk): on bandwidth-poor v5e this padded copy is one extra HBM pass
    # over the activations; it could be folded into the kernel with a
    # zero-initialized VMEM scratch + per-row DMAs.
    xb = x.astype(compute_dtype)
    xb = jnp.pad(xb, ((0, 0), (0, c_pad - c_in), (1, 1), (1, 1)))   # (N,Cp,Hp,Wp)
    xb = xb.reshape(n, c_pad, p)
    xb = jnp.pad(xb, ((0, 0), (0, 0), (halo, slab - p - halo)))     # (N,Cp,Slab)
    # Concatenate B_blk image slabs along the lane axis -> one long MXU stream.
    # Cross-image tap reads only land in lanes that the wrapper discards.
    xb = xb.reshape(g, b_blk, c_pad, slab).transpose(0, 2, 1, 3)
    xb = xb.reshape(g, c_pad, l_out)
    xb = jnp.pad(xb, ((0, 0), (0, 0), (0, trail)))                  # (G,Cp,L_in)

    # Weights pre-packed into a single lane-dense (C_out, 9*C_pad) bf16 block:
    # column k = (kh*3 + kw)*C_pad + c  <->  scratch row of tap (kh,kw), chan c.
    wb = weight.astype(compute_dtype)
    wb = jnp.pad(wb, ((0, 0), (0, c_pad - c_in), (0, 0), (0, 0)))
    w_packed = jnp.transpose(wb, (0, 2, 3, 1)).reshape(c_out, k_pack)

    b2d = bias.astype(jnp.float32).reshape(c_out, 1)

    # Tap (kh, kw) reads the in-slab lane window starting at kh*Wp + kw.
    tap_starts = tuple(kh * wp + kw for kh in range(_KH) for kw in range(_KW))

    kernel = _make_conv3x3_relu_kernel(tap_starts, c_pad, c_out, l_out)

    flops = 2 * g * c_out * k_pack * l_out
    bytes_accessed = (xb.size * 2 + w_packed.size * 2 + b2d.size * 4
                      + g * c_out * l_out * 4)

    out_flat = pl.pallas_call(
        kernel,
        out_shape=jax.ShapeDtypeStruct((g, c_out, l_out), jnp.float32),
        grid_spec=pltpu.PrefetchScalarGridSpec(
            num_scalar_prefetch=0,
            grid=(g,),
            in_specs=[
                # One block of B_blk lane-concatenated images per grid step.
                pl.BlockSpec((1, c_pad, l_in), lambda i: (i, 0, 0)),
                # Tiny constant weight / bias blocks: same block every step.
                pl.BlockSpec((c_out, k_pack), lambda i: (0, 0)),
                pl.BlockSpec((c_out, 1), lambda i: (0, 0)),
            ],
            out_specs=pl.BlockSpec((1, c_out, l_out), lambda i: (i, 0, 0)),
            scratch_shapes=[pltpu.VMEM((k_pack, l_out), compute_dtype)],
        ),
        compiler_params=pltpu.CompilerParams(
            # Batch-block axis is independent -> dual-TC chips split it.
            dimension_semantics=("parallel",),
        ),
        cost_estimate=pl.CostEstimate(
            flops=flops, transcendentals=0, bytes_accessed=bytes_accessed),
    )(xb, w_packed, b2d)

    # Undo the slab layout and drop the padded border ring.
    # TODO(synk): ~18% of stored lanes (slab/border padding) are discarded here;
    # a strided valid-row store in the kernel would save this output HBM pass.
    out = out_flat.reshape(g, c_out, b_blk, slab).transpose(0, 2, 1, 3)
    out = out.reshape(n, c_out, slab)[:, :, :p]
    out = out.reshape(n, c_out, hp, wp)[:, :, 1:h + 1, 1:w + 1]
    return out


class DistributedDataParallelC10dPallas:
    """Forward-pass equivalent of torch.nn._DistributedDataParallelC10d
    wrapping Conv2d(3x3, pad=1) + ReLU.

    scatter(dim=0) -> parallel_apply over identical replicas -> gather(dim=0)
    collapses to one fused kernel over the full batch.  Parameter / buffer
    broadcast is a numerical no-op for identical replicas.
    """

    def __init__(self, weight, bias, num_devices=1):
        self.weight = weight
        self.bias = bias
        self.num_devices = max(int(num_devices), 1)

    def __call__(self, x):
        n = x.shape[0]
        # DDP contract: batch size is an integer multiple of the replica count
        # so every replica gets an equal chunk.
        assert n % self.num_devices == 0, (
            "batch size must be a multiple of the number of device replicas")
        # TODO(synk): c10d gradient-bucket all_reduce and broadcast_coalesced of
        # params/buffers are backward-pass / multi-process communication and are
        # not part of the forward compute modeled here.
        return conv3x3_relu_pallas(x, self.weight, self.bias)


def _reference_conv3x3_relu(x, weight, bias):
    """Pure-JAX reference on the same bf16-quantized inputs, f32 math."""
    xq = x.astype(jnp.bfloat16).astype(jnp.float32)
    wq = weight.astype(jnp.bfloat16).astype(jnp.float32)
    y = jax.lax.conv_general_dilated(
        xq, wq, window_strides=(1, 1), padding=((1, 1), (1, 1)),
        dimension_numbers=("NCHW", "OIHW", "NCHW"))
    y = y + bias.astype(jnp.float32).reshape(1, -1, 1, 1)
    return jnp.maximum(y, 0.0)


if __name__ == "__main__":
    key = jax.random.PRNGKey(0)
    kx, kw, kb = jax.random.split(key, 3)

    N, C_IN, H, W = 2, 4, 16, 16
    C_OUT = 8

    x = jax.random.normal(kx, (N, C_IN, H, W), dtype=jnp.float32)
    weight = 0.1 * jax.random.normal(kw, (C_OUT, C_IN, _KH, _KW), dtype=jnp.float32)
    bias = 0.1 * jax.random.normal(kb, (C_OUT,), dtype=jnp.float32)

    ddp = DistributedDataParallelC10dPallas(weight, bias, num_devices=2)
    out = jax.block_until_ready(ddp(x))

    assert out.shape == (N, C_OUT, H, W), out.shape

    ref = _reference_conv3x3_relu(x, weight, bias)
    max_err = jnp.max(jnp.abs(out.astype(jnp.float32) - ref))
    assert jnp.allclose(out.astype(jnp.float32), ref, atol=5e-2, rtol=5e-2), (
        "max abs error %s" % max_err)

    print("KERNEL_OK")
</pallas_src>

<mosaic_0001>
module attributes {stable_mosaic.version = 11 : i64} {
  func.func @kernel(%arg0: i32, %arg1: memref<1x8x512xbf16, #tpu.memory_space<vmem>>, %arg2: memref<8x72xbf16, #tpu.memory_space<vmem>>, %arg3: memref<8x1xf32, #tpu.memory_space<vmem>>, %arg4: memref<1x8x384xf32, #tpu.memory_space<vmem>>, %arg5: memref<72x384xbf16, #tpu.memory_space<vmem>>) attributes {dimension_semantics = [#tpu.dimension_semantics<parallel>], iteration_bounds = array<i64: 2>, scalar_prefetch = 0 : i64, scratch_operands = 1 : i64, tpu.core_type = #tpu.core_type<tc>, window_params = [{transform_indices = @transform_0, window_bounds = array<i64: 1, 8, 512>}, {pipeline_mode = #tpu.pipeline_mode<synchronous>, transform_indices = @transform_1, window_bounds = array<i64: 8, 72>}, {pipeline_mode = #tpu.pipeline_mode<synchronous>, transform_indices = @transform_2, window_bounds = array<i64: 8, 1>}, {transform_indices = @transform_3, window_bounds = array<i64: 1, 8, 384>}]} {
    %c0 = arith.constant 0 : index
    %c0_0 = arith.constant 0 : index
    %c0_1 = arith.constant 0 : index
    %0 = vector.load %arg1[%c0, %c0_0, %c0_1] : memref<1x8x512xbf16, #tpu.memory_space<vmem>>, vector<1x8x384xbf16>
    %1 = vector.shape_cast %0 : vector<1x8x384xbf16> to vector<8x384xbf16>
    %c0_2 = arith.constant 0 : index
    %c0_3 = arith.constant 0 : index
    %2 = vector.load %arg5[%c0_2, %c0_3] : memref<72x384xbf16, #tpu.memory_space<vmem>>, vector<8x384xbf16>
    tpu.vector_store %arg5[%c0_2, %c0_3], %1 {strides = array<i32>} : memref<72x384xbf16, #tpu.memory_space<vmem>>, vector<8x384xbf16>,
    %c0_4 = arith.constant 0 : index
    %c0_5 = arith.constant 0 : index
    %c1 = arith.constant 1 : index
    %3 = vector.load %arg1[%c0_4, %c0_5, %c1] : memref<1x8x512xbf16, #tpu.memory_space<vmem>>, vector<1x8x384xbf16>
    %4 = vector.shape_cast %3 : vector<1x8x384xbf16> to vector<8x384xbf16>
    %c8 = arith.constant 8 : index
    %c0_6 = arith.constant 0 : index
    %5 = vector.load %arg5[%c8, %c0_6] : memref<72x384xbf16, #tpu.memory_space<vmem>>, vector<8x384xbf16>
    tpu.vector_store %arg5[%c8, %c0_6], %4 {strides = array<i32>} : memref<72x384xbf16, #tpu.memory_space<vmem>>, vector<8x384xbf16>,
    %c0_7 = arith.constant 0 : index
    %c0_8 = arith.constant 0 : index
    %c2 = arith.constant 2 : index
    %6 = vector.load %arg1[%c0_7, %c0_8, %c2] : memref<1x8x512xbf16, #tpu.memory_space<vmem>>, vector<1x8x384xbf16>
    %7 = vector.shape_cast %6 : vector<1x8x384xbf16> to vector<8x384xbf16>
    %c16 = arith.constant 16 : index
    %c0_9 = arith.constant 0 : index
    %8 = vector.load %arg5[%c16, %c0_9] : memref<72x384xbf16, #tpu.memory_space<vmem>>, vector<8x384xbf16>
    tpu.vector_store %arg5[%c16, %c0_9], %7 {strides = array<i32>} : memref<72x384xbf16, #tpu.memory_space<vmem>>, vector<8x384xbf16>,
    %c0_10 = arith.constant 0 : index
    %c0_11 = arith.constant 0 : index
    %c18 = arith.constant 18 : index
    %9 = vector.load %arg1[%c0_10, %c0_11, %c18] : memref<1x8x512xbf16, #tpu.memory_space<vmem>>, vector<1x8x384xbf16>
    %10 = vector.shape_cast %9 : vector<1x8x384xbf16> to vector<8x384xbf16>
    %c24 = arith.constant 24 : index
    %c0_12 = arith.constant 0 : index
    %11 = vector.load %arg5[%c24, %c0_12] : memref<72x384xbf16, #tpu.memory_space<vmem>>, vector<8x384xbf16>
    tpu.vector_store %arg5[%c24, %c0_12], %10 {strides = array<i32>} : memref<72x384xbf16, #tpu.memory_space<vmem>>, vector<8x384xbf16>,
    %c0_13 = arith.constant 0 : index
    %c0_14 = arith.constant 0 : index
    %c19 = arith.constant 19 : index
    %12 = vector.load %arg1[%c0_13, %c0_14, %c19] : memref<1x8x512xbf16, #tpu.memory_space<vmem>>, vector<1x8x384xbf16>
    %13 = vector.shape_cast %12 : vector<1x8x384xbf16> to vector<8x384xbf16>
    %c32 = arith.constant 32 : index
    %c0_15 = arith.constant 0 : index
    %14 = vector.load %arg5[%c32, %c0_15] : memref<72x384xbf16, #tpu.memory_space<vmem>>, vector<8x384xbf16>
    tpu.vector_store %arg5[%c32, %c0_15], %13 {strides = array<i32>} : memref<72x384xbf16, #tpu.memory_space<vmem>>, vector<8x384xbf16>,
    %c0_16 = arith.constant 0 : index
    %c0_17 = arith.constant 0 : index
    %c20 = arith.constant 20 : index
    %15 = vector.load %arg1[%c0_16, %c0_17, %c20] : memref<1x8x512xbf16, #tpu.memory_space<vmem>>, vector<1x8x384xbf16>
    %16 = vector.shape_cast %15 : vector<1x8x384xbf16> to vector<8x384xbf16>
    %c40 = arith.constant 40 : index
    %c0_18 = arith.constant 0 : index
    %17 = vector.load %arg5[%c40, %c0_18] : memref<72x384xbf16, #tpu.memory_space<vmem>>, vector<8x384xbf16>
    tpu.vector_store %arg5[%c40, %c0_18], %16 {strides = array<i32>} : memref<72x384xbf16, #tpu.memory_space<vmem>>, vector<8x384xbf16>,
    %c0_19 = arith.constant 0 : index
    %c0_20 = arith.constant 0 : index
    %c36 = arith.constant 36 : index
    %18 = vector.load %arg1[%c0_19, %c0_20, %c36] : memref<1x8x512xbf16, #tpu.memory_space<vmem>>, vector<1x8x384xbf16>
    %19 = vector.shape_cast %18 : vector<1x8x384xbf16> to vector<8x384xbf16>
    %c48 = arith.constant 48 : index
    %c0_21 = arith.constant 0 : index
    %20 = vector.load %arg5[%c48, %c0_21] : memref<72x384xbf16, #tpu.memory_space<vmem>>, vector<8x384xbf16>
    tpu.vector_store %arg5[%c48, %c0_21], %19 {strides = array<i32>} : memref<72x384xbf16, #tpu.memory_space<vmem>>, vector<8x384xbf16>,
    %c0_22 = arith.constant 0 : index
    %c0_23 = arith.constant 0 : index
    %c37 = arith.constant 37 : index
    %21 = vector.load %arg1[%c0_22, %c0_23, %c37] : memref<1x8x512xbf16, #tpu.memory_space<vmem>>, vector<1x8x384xbf16>
    %22 = vector.shape_cast %21 : vector<1x8x384xbf16> to vector<8x384xbf16>
    %c56 = arith.constant 56 : index
    %c0_24 = arith.constant 0 : index
    %23 = vector.load %arg5[%c56, %c0_24] : memref<72x384xbf16, #tpu.memory_space<vmem>>, vector<8x384xbf16>
    tpu.vector_store %arg5[%c56, %c0_24], %22 {strides = array<i32>} : memref<72x384xbf16, #tpu.memory_space<vmem>>, vector<8x384xbf16>,
    %c0_25 = arith.constant 0 : index
    %c0_26 = arith.constant 0 : index
    %c38 = arith.constant 38 : index
    %24 = vector.load %arg1[%c0_25, %c0_26, %c38] : memref<1x8x512xbf16, #tpu.memory_space<vmem>>, vector<1x8x384xbf16>
    %25 = vector.shape_cast %24 : vector<1x8x384xbf16> to vector<8x384xbf16>
    %c64 = arith.constant 64 : index
    %c0_27 = arith.constant 0 : index
    %26 = vector.load %arg5[%c64, %c0_27] : memref<72x384xbf16, #tpu.memory_space<vmem>>, vector<8x384xbf16>
    tpu.vector_store %arg5[%c64, %c0_27], %25 {strides = array<i32>} : memref<72x384xbf16, #tpu.memory_space<vmem>>, vector<8x384xbf16>,
    %c0_28 = arith.constant 0 : index
    %c0_29 = arith.constant 0 : index
    %27 = vector.load %arg2[%c0_28, %c0_29] : memref<8x72xbf16, #tpu.memory_space<vmem>>, vector<8x72xbf16>
    %c0_30 = arith.constant 0 : index
    %c0_31 = arith.constant 0 : index
    %28 = vector.load %arg5[%c0_30, %c0_31] : memref<72x384xbf16, #tpu.memory_space<vmem>>, vector<72x384xbf16>
    %cst = arith.constant dense<0.000000e+00> : vector<8x384xf32>
    %29 = tpu.matmul %27, %28, %cst {dimension_numbers = #tpu.dot_dimension_numbers<[1], [0], [0], [1], [0, 0, 1, 1], [], []>} : vector<8x72xbf16>, vector<72x384xbf16>, vector<8x384xf32> -> vector<8x384xf32>
    %c0_32 = arith.constant 0 : index
    %c0_33 = arith.constant 0 : index
    %30 = vector.load %arg3[%c0_32, %c0_33] : memref<8x1xf32, #tpu.memory_space<vmem>>, vector<8x1xf32>
    %31 = vector.broadcast %30 : vector<8x1xf32> to vector<8x384xf32>
    %32 = arith.addf %29, %31 : vector<8x384xf32>
    %cst_34 = arith.constant 0.000000e+00 : f32
    %33 = vector.broadcast %cst_34 : f32 to vector<8x384xf32>
    %34 = arith.maximumf %32, %33 : vector<8x384xf32>
    %c0_35 = arith.constant 0 : index
    %c0_36 = arith.constant 0 : index
    %c0_37 = arith.constant 0 : index
    %35 = vector.load %arg4[%c0_35, %c0_36, %c0_37] : memref<1x8x384xf32, #tpu.memory_space<vmem>>, vector<1x8x384xf32>
    %36 = vector.shape_cast %35 : vector<1x8x384xf32> to vector<8x384xf32>
    %37 = vector.shape_cast %34 : vector<8x384xf32> to vector<1x8x384xf32>
    tpu.vector_store %arg4[%c0_35, %c0_36, %c0_37], %37 {strides = array<i32>} : memref<1x8x384xf32, #tpu.memory_space<vmem>>, vector<1x8x384xf32>,
    return
  }
  func.func @transform_0(%arg0: i32) -> (i32, i32, i32) {
    %c0_i32 = arith.constant 0 : i32
    %c0_i32_0 = arith.constant 0 : i32
    %c0_i32_1 = arith.constant 0 : i32
    return %arg0, %c0_i32, %c0_i32_0 : i32, i32, i32
  }
  func.func @transform_1(%arg0: i32) -> (i32, i32) {
    %c0_i32 = arith.constant 0 : i32
    %c0_i32_0 = arith.constant 0 : i32
    %c0_i32_1 = arith.constant 0 : i32
    return %c0_i32, %c0_i32_0 : i32, i32
  }
  func.func @transform_2(%arg0: i32) -> (i32, i32) {
    %c0_i32 = arith.constant 0 : i32
    %c0_i32_0 = arith.constant 0 : i32
    %c0_i32_1 = arith.constant 0 : i32
    return %c0_i32, %c0_i32_0 : i32, i32
  }
  func.func @transform_3(%arg0: i32) -> (i32, i32, i32) {
    %c0_i32 = arith.constant 0 : i32
    %c0_i32_0 = arith.constant 0 : i32
    %c0_i32_1 = arith.constant 0 : i32
    return %arg0, %c0_i32, %c0_i32_0 : i32, i32, i32
  }
}

</mosaic_0001>

<llo_original>
// kernel: conv3x3_relu_pallas.1
$region0: #{conv3x3_relu_pallas.1}
  #allocation0 [shape = 'u32[]', space=smem, size = 0x4, offset = 0x4, fixed_abs, tag = 'smem constant byte address 0x4 - core index']
  #allocation1 [shape = 'u32[144,128]{1,0:T(1,128)}', space=vmem, size = 0x12000, scoped, tag = 'internal scratch']
  #allocation2 [shape = 'bf16[72,384]{1,0:T(8,128)(2,1)}', space=vmem, size = 0xd800, scoped, tag = 'scratch operand']
  %s0 = inlined_call_operand.vmem [shape: bf16[2,8,512], index: 0, kind: input, shape index: {}]
  %s1 = inlined_call_operand.vmem [shape: bf16[8,72], index: 1, kind: input, shape index: {}]
  %s2 = inlined_call_operand.vmem [shape: f32[8,1], index: 2, kind: input, shape index: {}]
  %s3 = inlined_call_operand.vmem [shape: f32[2,8,384], index: 3, kind: output, shape index: {}]
  %s4 = sld [smem:[#allocation0]]
  $region45: #{conv3x3_relu_pallas.1} parent=0
    _
  %s6 = ssub.s32 1, %s4
  %s7 = scalar_select 0, %s6, %s4
  loop: start=0, step=1, limit=4
  $region2: #{conv3x3_relu_pallas.1} parent=0 // loop_pre_header
    _
  $region3: #{conv3x3_relu_pallas.1} parent=0 // loop_header
    %s9 = sphi 0, %s13
    %p10 = scmp.ge.s32.totalorder %s9, 4
    %s19 = sphi 0, %s21
    %s22 = sphi 0, %s19
    %s23 = sphi 0, %s22
    %s39 = sphi 0, %s23
    %s43 = sphi 0, %s43
    %s45 = sphi 0, %s43
    %s46 = sphi 0, %s45
    %s60 = sphi 0, %s46
    %s64 = sphi 0, %s64
    %s66 = sphi 0, %s64
    %s67 = sphi 0, %s66
    %s81 = sphi 0, %s67
    %s87 = sphi 0, %s89
    %s90 = sphi 0, %s87
    %s91 = sphi 0, %s90
    %s107 = sphi 0, %s91
  $region4: #{conv3x3_relu_pallas.1} parent=0 // loop_header_branch
    %12 = sbr.rel (%p10) target = $region8
  $region5: #{conv3x3_relu_pallas.1} parent=0 // loop_body
    %s14 = ssub.s32 %s9, 1
    %s15 = ssub.s32 %s9, 2
    %s16 = sadd.s32 %s9, 1
    %s17 = ssub.s32 %s9, %s16
    %p18 = scmp.eq.s32.totalorder %s17, 0
    %s20 = sadd.s32 %s19, 1
    %s21 = scalar_select %p18, %s19, %s20
    %p24 = pneg %p18
    %p25 = scmp.eq.s32.totalorder %s9, 1
    %p26 = por %p24, %p25
    %p27 = scmp.ne.s32.totalorder %s19, %s22
    %p28 = scmp.eq.s32.totalorder %s9, 0
    %p29 = por %p27, %p28
    %p30 = scmp.ne.s32.totalorder %s19, %s22
    %p31 = scmp.eq.s32.totalorder %s14, 1
    %p32 = por %p30, %p31
    %p33 = scmp.ne.s32.totalorder %s22, %s23
    %p34 = scmp.eq.s32.totalorder %s14, 0
    %p35 = por %p33, %p34
    %p36 = scmp.ne.s32.totalorder %s22, %s23
    %p37 = scmp.eq.s32.totalorder %s15, 1
    %p38 = por %p36, %p37
    %p40 = scmp.ne.s32.totalorder %s23, %s39
    %p41 = scmp.eq.s32.totalorder %s15, 0
    %p42 = por %p40, %p41
    %s44 = sadd.s32 %s43, 1
    %p47 = scmp.eq.s32.totalorder %s9, 1
    %p48 = scmp.ne.s32.totalorder %s43, %s45
    %p49 = scmp.eq.s32.totalorder %s9, 0
    %p50 = por %p48, %p49
    %p51 = scmp.ne.s32.totalorder %s43, %s45
    %p52 = scmp.eq.s32.totalorder %s14, 1
    %p53 = por %p51, %p52
    %p54 = scmp.ne.s32.totalorder %s45, %s46
    %p55 = scmp.eq.s32.totalorder %s14, 0
    %p56 = por %p54, %p55
    %p57 = scmp.ne.s32.totalorder %s45, %s46
    %p58 = scmp.eq.s32.totalorder %s15, 1
    %p59 = por %p57, %p58
    %p61 = scmp.ne.s32.totalorder %s46, %s60
    %p62 = scmp.eq.s32.totalorder %s15, 0
    %p63 = por %p61, %p62
    %s65 = sadd.s32 %s64, 1
    %p68 = scmp.eq.s32.totalorder %s9, 1
    %p69 = scmp.ne.s32.totalorder %s64, %s66
    %p70 = scmp.eq.s32.totalorder %s9, 0
    %p71 = por %p69, %p70
    %p72 = scmp.ne.s32.totalorder %s64, %s66
    %p73 = scmp.eq.s32.totalorder %s14, 1
    %p74 = por %p72, %p73
    %p75 = scmp.ne.s32.totalorder %s66, %s67
    %p76 = scmp.eq.s32.totalorder %s14, 0
    %p77 = por %p75, %p76
    %p78 = scmp.ne.s32.totalorder %s66, %s67
    %p79 = scmp.eq.s32.totalorder %s15, 1
    %p80 = por %p78, %p79
    %p82 = scmp.ne.s32.totalorder %s67, %s81
    %p83 = scmp.eq.s32.totalorder %s15, 0
    %p84 = por %p82, %p83
    %s85 = ssub.s32 %s9, %s16
    %p86 = scmp.eq.s32.totalorder %s85, 0
    %s88 = sadd.s32 %s87, 1
    %s89 = scalar_select %p86, %s87, %s88
    %p92 = pneg %p86
    %p93 = scmp.eq.s32.totalorder %s9, 1
    %p94 = por %p92, %p93
    %p95 = scmp.ne.s32.totalorder %s87, %s90
    %p96 = scmp.eq.s32.totalorder %s9, 0
    %p97 = por %p95, %p96
    %p98 = scmp.ne.s32.totalorder %s87, %s90
    %p99 = scmp.eq.s32.totalorder %s14, 1
    %p100 = por %p98, %p99
    %p101 = scmp.ne.s32.totalorder %s90, %s91
    %p102 = scmp.eq.s32.totalorder %s14, 0
    %p103 = por %p101, %p102
    %p104 = scmp.ne.s32.totalorder %s90, %s91
    %p105 = scmp.eq.s32.totalorder %s15, 1
    %p106 = por %p104, %p105
    %p108 = scmp.ne.s32.totalorder %s91, %s107
    %p109 = scmp.eq.s32.totalorder %s15, 0
    %p110 = por %p108, %p109
    %p111 = scmp.le.s32.totalorder 1, %s9
    %p112 = scmp.lt.s32.totalorder %s9, 3
    %p113 = pnand %p111, %p112
    %p114 = pneg %p113
    // Predicated region
    $region9: #{conv3x3_relu_pallas.1} parent=5 // pred_check
      _
    $region10: #{conv3x3_relu_pallas.1} parent=5 // pred_check_branch
      %116 = sbr.rel (%p113) target = $region12
    $region11: #{conv3x3_relu_pallas.1} parent=5 // pred_region
      %s117 = ssub.s32 %s9, 1
      // Predicated region
      $region13: #{conv3x3_relu_pallas.1} parent=11 // pred_check
        %p118 = pneg %p56
      $region14: #{conv3x3_relu_pallas.1} parent=11 // pred_check_branch
        %120 = sbr.rel (%p118) target = $region16
      $region15: #{conv3x3_relu_pallas.1} parent=11 // pred_region
        _
      $region16: #{conv3x3_relu_pallas.1} parent=11 // pred_fallthru
        _
      // Predicated region
      $region17: #{conv3x3_relu_pallas.1} parent=11 // pred_check
        %p121 = pneg %p77
      $region18: #{conv3x3_relu_pallas.1} parent=11 // pred_check_branch
        %123 = sbr.rel (%p121) target = $region20
      $region19: #{conv3x3_relu_pallas.1} parent=11 // pred_region
        _
      $region20: #{conv3x3_relu_pallas.1} parent=11 // pred_fallthru
        _
    $region12: #{conv3x3_relu_pallas.1} parent=5 // pred_fallthru
      _
    %p124 = scmp.lt.s32.totalorder %s9, 2
    // Predicated region
    $region21: #{conv3x3_relu_pallas.1} parent=5 // pred_check
      %p125 = pneg %p124
    $region22: #{conv3x3_relu_pallas.1} parent=5 // pred_check_branch
      %127 = sbr.rel (%p125) target = $region24
    $region23: #{conv3x3_relu_pallas.1} parent=5 // pred_region
      // Predicated region
      $region25: #{conv3x3_relu_pallas.1} parent=23 // pred_check
        %p128 = pneg %p29
      $region26: #{conv3x3_relu_pallas.1} parent=23 // pred_check_branch
        %130 = sbr.rel (%p128) target = $region28
      $region27: #{conv3x3_relu_pallas.1} parent=23 // pred_region
        %p131 = scmp.lt.s32.totalorder %s9, 1
        %s132 = scalar_select %p131, %s9, 1
        %s133 = smul.addr %s132, 4
        %s134 = smul.addr %s133, 4
        %s135 = scalar_lea.vmem %s0, %s134
      $region28: #{conv3x3_relu_pallas.1} parent=23 // pred_fallthru
        _
    $region24: #{conv3x3_relu_pallas.1} parent=5 // pred_fallthru
      _
    %p136 = scmp.le.s32.totalorder 1, %s9
    %p137 = scmp.lt.s32.totalorder %s9, 3
    %p138 = pnand %p136, %p137
    %p139 = pneg %p138
    // Predicated region
    $region29: #{conv3x3_relu_pallas.1} parent=5 // pred_check
      _
    $region30: #{conv3x3_relu_pallas.1} parent=5 // pred_check_branch
      %141 = sbr.rel (%p138) target = $region32
    $region31: #{conv3x3_relu_pallas.1} parent=5 // pred_region
      %s142 = ssub.s32 %s9, 1
      %p143 = scmp.lt.s32.totalorder %s14, 1
      %s144 = scalar_select %p143, %s14, 1
      %s145 = smul.addr %s144, 4
      %s146 = smul.addr %s145, 4
      %s147 = scalar_lea.vmem %s0, %s146
      %p148 = pneg %p35
      %p149 = pneg %p32
      %p150 = pneg %p56
      %p151 = pneg %p53
      %p152 = pneg %p77
      %p153 = pneg %p74
      %p154 = pneg %p103
      %p155 = pneg %p100
      %p156 = scmp.lt.s32.totalorder %s14, 1
      %s157 = scalar_select %p156, %s14, 1
      %s158 = smul.addr %s157, 3
      %s159 = smul.addr %s158, 8
      %s160 = scalar_lea.vmem %s3, %s159
      %p161 = scmp.lt.s32.totalorder %s14, 1
      %s162 = scalar_select %p161, %s14, 1
      %s163 = smul.addr %s162, 4
      %s164 = smul.addr %s163, 4
      %s165 = scalar_lea.vmem %s0, %s164
      %p166 = scmp.lt.s32.totalorder %s14, 1
      %s167 = scalar_select %p166, %s14, 1
      %s168 = smul.addr %s167, 3
      %s169 = smul.addr %s168, 8
      %s170 = scalar_lea.vmem %s3, %s169
      %v172 = vld [vmem:[%s165] sm:$0xff]
      %v173 = vld [vmem:[%s165 + $0x8] sm:$0xf]
      %174 = vst [vmem:[#allocation2] sm:$0xff] %v172
      %175 = vst [vmem:[#allocation2 + $0x8] sm:$0xf] %v173
      %v176 = vld [vmem:[%s165] sm:$0xff]
      %v177 = vld [vmem:[%s165 + $0x8] sm:$0xff]
      %180 = vrot.lane.b32.xlu0 %v176, 127
      %v181 = vpop.permute.xlu0 %180
      %182 = vrot.lane.b32.xlu0 %v177, 127
      %v183 = vpop.permute.xlu0 %182
      %v184 = vrot.slane %v181, 4
      %v185 = vrot.slane %v183, 4
      %vm186 = vcmask 1043456
      %v187 = vsel %vm186, %v184, %v185
      %vm188 = vcmask 1039360
      %v189 = vsel %vm188, %v181, %v187
      %v190 = vsel %vm188, %v183, %v185
      %193 = vst [vmem:[#allocation2 + $0xc] sm:$0xff] %v189
      %194 = vst [vmem:[#allocation2 + $0x14] sm:$0xf] %v190
      %v195 = vld [vmem:[%s165] sm:$0xff]
      %v196 = vld [vmem:[%s165 + $0x8] sm:$0xff]
      %199 = vrot.lane.b32.xlu0 %v195, 126
      %v200 = vpop.permute.xlu0 %199
      %201 = vrot.lane.b32.xlu0 %v196, 126
      %v202 = vpop.permute.xlu0 %201
      %v203 = vrot.slane %v200, 4
      %v204 = vrot.slane %v202, 4
      %v205 = vsel %vm186, %v203, %v204
      %vm206 = vcmask 1031168
      %v207 = vsel %vm206, %v200, %v205
      %v208 = vsel %vm206, %v202, %v204
      %211 = vst [vmem:[#allocation2 + $0x18] sm:$0xff] %v207
      %212 = vst [vmem:[#allocation2 + $0x20] sm:$0xf] %v208
      %v213 = vld [vmem:[%s165] sm:$0xff]
      %v214 = vld [vmem:[%s165 + $0x8] sm:$0xff]
      %217 = vrot.lane.b32.xlu0 %v213, 110
      %v218 = vpop.permute.xlu0 %217
      %219 = vrot.lane.b32.xlu0 %v214, 110
      %v220 = vpop.permute.xlu0 %219
      %v221 = vrot.slane %v218, 4
      %v222 = vrot.slane %v220, 4
      %v223 = vsel %vm186, %v221, %v222
      %vm224 = vcmask 900096
      %v225 = vsel %vm224, %v218, %v223
      %v226 = vsel %vm224, %v220, %v222
      %229 = vst [vmem:[#allocation2 + $0x24] sm:$0xff] %v225
      %230 = vst [vmem:[#allocation2 + $0x2c] sm:$0xf] %v226
      %v231 = vld [vmem:[%s165] sm:$0xff]
      %v232 = vld [vmem:[%s165 + $0x8] sm:$0xff]
      %235 = vrot.lane.b32.xlu0 %v231, 109
      %v236 = vpop.permute.xlu0 %235
      %237 = vrot.lane.b32.xlu0 %v232, 109
      %v238 = vpop.permute.xlu0 %237
      %v239 = vrot.slane %v236, 4
      %v240 = vrot.slane %v238, 4
      %v241 = vsel %vm186, %v239, %v240
      %vm242 = vcmask 891904
      %v243 = vsel %vm242, %v236, %v241
      %v244 = vsel %vm242, %v238, %v240
      %247 = vst [vmem:[#allocation2 + $0x30] sm:$0xff] %v243
      %248 = vst [vmem:[#allocation2 + $0x38] sm:$0xf] %v244
      %v249 = vld [vmem:[%s165] sm:$0xff]
      %v250 = vld [vmem:[%s165 + $0x8] sm:$0xff]
      %253 = vrot.lane.b32.xlu0 %v249, 108
      %v254 = vpop.permute.xlu0 %253
      %255 = vrot.lane.b32.xlu0 %v250, 108
      %v256 = vpop.permute.xlu0 %255
      %v257 = vrot.slane %v254, 4
      %v258 = vrot.slane %v256, 4
      %v259 = vsel %vm186, %v257, %v258
      %vm260 = vcmask 883712
      %v261 = vsel %vm260, %v254, %v259
      %v262 = vsel %vm260, %v256, %v258
      %265 = vst [vmem:[#allocation2 + $0x3c] sm:$0xff] %v261
      %266 = vst [vmem:[#allocation2 + $0x44] sm:$0xf] %v262
      %v267 = vld [vmem:[%s165] sm:$0xff]
      %v268 = vld [vmem:[%s165 + $0x8] sm:$0xff]
      %271 = vrot.lane.b32.xlu0 %v267, 92
      %v272 = vpop.permute.xlu0 %271
      %273 = vrot.lane.b32.xlu0 %v268, 92
      %v274 = vpop.permute.xlu0 %273
      %v275 = vrot.slane %v272, 4
      %v276 = vrot.slane %v274, 4
      %v277 = vsel %vm186, %v275, %v276
      %vm278 = vcmask 752640
      %v279 = vsel %vm278, %v272, %v277
      %v280 = vsel %vm278, %v274, %v276
      %283 = vst [vmem:[#allocation2 + $0x48] sm:$0xff] %v279
      %284 = vst [vmem:[#allocation2 + $0x50] sm:$0xf] %v280
      %v285 = vld [vmem:[%s165] sm:$0xff]
      %v286 = vld [vmem:[%s165 + $0x8] sm:$0xff]
      %289 = vrot.lane.b32.xlu0 %v285, 91
      %v290 = vpop.permute.xlu0 %289
      %291 = vrot.lane.b32.xlu0 %v286, 91
      %v292 = vpop.permute.xlu0 %291
      %v293 = vrot.slane %v290, 4
      %v294 = vrot.slane %v292, 4
      %v295 = vsel %vm186, %v293, %v294
      %vm296 = vcmask 744448
      %v297 = vsel %vm296, %v290, %v295
      %v298 = vsel %vm296, %v292, %v294
      %301 = vst [vmem:[#allocation2 + $0x54] sm:$0xff] %v297
      %302 = vst [vmem:[#allocation2 + $0x5c] sm:$0xf] %v298
      %v303 = vld [vmem:[%s165] sm:$0xff]
      %v304 = vld [vmem:[%s165 + $0x8] sm:$0xff]
      %307 = vrot.lane.b32.xlu0 %v303, 90
      %v308 = vpop.permute.xlu0 %307
      %309 = vrot.lane.b32.xlu0 %v304, 90
      %v310 = vpop.permute.xlu0 %309
      %v311 = vrot.slane %v308, 4
      %v312 = vrot.slane %v310, 4
      %v313 = vsel %vm186, %v311, %v312
      %vm314 = vcmask 736256
      %v315 = vsel %vm314, %v308, %v313
      %v316 = vsel %vm314, %v310, %v312
      %319 = vst [vmem:[#allocation2 + $0x60] sm:$0xff] %v315
      %320 = vst [vmem:[#allocation2 + $0x68] sm:$0xf] %v316
      %v321 = vld [vmem:[%s1] sm:$0xf]
      %v322 = vld [vmem:[#allocation2] sm:$0xff]
      %v323 = vld [vmem:[#allocation2 + $0x8] sm:$0xf]
      %v324 = vld [vmem:[#allocation2 + $0xc] sm:$0xff]
      %v325 = vld [vmem:[#allocation2 + $0x14] sm:$0xf]
      %v326 = vld [vmem:[#allocation2 + $0x18] sm:$0xff]
      %v327 = vld [vmem:[#allocation2 + $0x20] sm:$0xf]
      %v328 = vld [vmem:[#allocation2 + $0x24] sm:$0xff]
      %v329 = vld [vmem:[#allocation2 + $0x2c] sm:$0xf]
      %v330 = vld [vmem:[#allocation2 + $0x30] sm:$0xff]
      %v331 = vld [vmem:[#allocation2 + $0x38] sm:$0xf]
      %v332 = vld [vmem:[#allocation2 + $0x3c] sm:$0xff]
      %v333 = vld [vmem:[#allocation2 + $0x44] sm:$0xf]
      %v334 = vld [vmem:[#allocation2 + $0x48] sm:$0xff]
      %v335 = vld [vmem:[#allocation2 + $0x50] sm:$0xf]
      %v336 = vld [vmem:[#allocation2 + $0x54] sm:$0xff]
      %v337 = vld [vmem:[#allocation2 + $0x5c] sm:$0xf]
      %v338 = vld [vmem:[#allocation2 + $0x60] sm:$0xff]
      %v339 = vld [vmem:[#allocation2 + $0x68] sm:$0xf]
      %v340 = vld [vmem:[%s2] sm:$0xff]
      %342 = vset.pattern.permute.xlu0 0
      %343 = vperm.xlu0 %342, %v340
      %v344 = vpop.permute.xlu0 %343
      %v364 = vunpack.c.l.b16 %v322
      %v365 = vunpack.c.h.b16 %v322
      %v366 = vunpack.c.l.b16 %v323
      %v367 = vunpack.c.l.b16 %v324
      %v368 = vunpack.c.h.b16 %v324
      %v369 = vunpack.c.l.b16 %v325
      %v370 = vunpack.c.l.b16 %v326
      %v371 = vunpack.c.h.b16 %v326
      %v372 = vunpack.c.l.b16 %v327
      %v373 = vunpack.c.l.b16 %v328
      %v374 = vunpack.c.h.b16 %v328
      %v375 = vunpack.c.l.b16 %v329
      %v376 = vunpack.c.l.b16 %v330
      %v377 = vunpack.c.h.b16 %v330
      %v378 = vunpack.c.l.b16 %v331
      %v379 = vunpack.c.l.b16 %v332
      %v380 = vunpack.c.h.b16 %v332
      %v381 = vunpack.c.l.b16 %v333
      %v382 = vunpack.c.l.b16 %v334
      %v383 = vunpack.c.h.b16 %v334
      %v384 = vunpack.c.l.b16 %v335
      %v385 = vunpack.c.l.b16 %v336
      %v386 = vunpack.c.h.b16 %v336
      %v387 = vunpack.c.l.b16 %v337
      %v388 = vunpack.c.l.b16 %v338
      %v389 = vunpack.c.h.b16 %v338
      %v390 = vunpack.c.l.b16 %v339
      %v391 = vpack.c.b16 %v367, %v364
      %v392 = vpack.c.b16 %v368, %v365
      %v393 = vpack.c.b16 %v369, %v366
      %v394 = vpack.c.b16 %v373, %v370
      %v395 = vpack.c.b16 %v374, %v371
      %v396 = vpack.c.b16 %v375, %v372
      %v397 = vpack.c.b16 %v379, %v376
      %v398 = vpack.c.b16 %v380, %v377
      %v399 = vpack.c.b16 %v381, %v378
      %v400 = vpack.c.b16 %v385, %v382
      %v401 = vpack.c.b16 %v386, %v383
      %v402 = vpack.c.b16 %v387, %v384
      %v403 = vpack.c.b16 %v388, %v388
      %v404 = vpack.c.b16 %v389, %v389
      %v405 = vpack.c.b16 %v390, %v390
      %vm418 = vcmask 588800
      %v420 = vsel %vm418, %v321, 0
      %vm422 = vcmask 1043456
      %v424 = vsel %vm422, %v403, 0
      %v427 = vsel %vm422, %v404, 0
      %v430 = vsel %vm422, %v405, 0
      %432 = vmatprep.subr.bf16.mxu0 %v392
      %433 = vmatpush1.bf16.msra.mxu0 %v391
      %434 = vmatprep.subr.bf16.mxu0 %v395
      %435 = vmatpush1.bf16.msra.mxu0 %v394
      %436 = vmatprep.subr.bf16.mxu0 %v398
      %437 = vmatpush1.bf16.msra.mxu0 %v397
      %438 = vmatprep.subr.bf16.mxu0 %v401
      %439 = vmatpush1.bf16.msra.mxu0 %v400
      %440 = vmatprep.subr.bf16.mxu0 %v427
      %441 = vmatpush1.bf16.msra.mxu0 %v424
      %442 = vmatprep.subr.bf16.mxu0 0
      %443 = vmatpush1.bf16.msra.mxu0 0
      %444 = vmatprep.subr.bf16.mxu0 0
      %445 = vmatpush1.bf16.msra.mxu0 0
      %446 = vmatprep.subr.bf16.mxu0 0
      %447 = vmatpush1.bf16.msra.mxu0 0
      %448 = vmatprep.subr.bf16.mxu0 0
      %449 = vmatpush1.bf16.msra.mxu0 0
      %450 = vmatprep.subr.bf16.mxu0 0
      %451 = vmatpush1.bf16.msra.mxu0 0
      %452 = vmatprep.subr.bf16.mxu0 0
      %453 = vmatpush1.bf16.msra.mxu0 0
      %454 = vmatprep.subr.bf16.mxu0 0
      %455 = vmatpush1.bf16.msra.mxu0 0
      %456 = vmatprep.subr.bf16.mxu0 0
      %457 = vmatpush1.bf16.msra.mxu0 0
      %458 = vmatprep.subr.bf16.mxu0 0
      %459 = vmatpush1.bf16.msra.mxu0 0
      %460 = vmatprep.subr.bf16.mxu0 0
      %461 = vmatpush1.bf16.msra.mxu0 0
      %462 = vmatprep.subr.bf16.mxu0 0
      %463 = vmatpush1.bf16.msra.mxu0 0
      %464 = vmatprep.mubr.bf16.mxu0 0
      %465 = vmatmul.mubr.bf16.gmra.mrb[0].mxu0 %v420
      %v466 = vpop.f32.mrb[0].mxu0
      %v467 = vadd.f32 %v344, %v466
      %v468 = vpop.f32.mrb[0].mxu0
      %v469 = vadd.f32 %v344, %v468
      %v470 = vpop.f32.mrb[0].mxu0
      %v471 = vpop.f32.mrb[0].mxu0
      %472 = vdwg.mxu0
      %473 = vmatprep.subr.bf16.mxu0 0
      %474 = vmatpush1.bf16.msra.mxu0 %v393
      %475 = vmatprep.subr.bf16.mxu0 0
      %476 = vmatpush1.bf16.msra.mxu0 %v396
      %477 = vmatprep.subr.bf16.mxu0 0
      %478 = vmatpush1.bf16.msra.mxu0 %v399
      %479 = vmatprep.subr.bf16.mxu0 0
      %480 = vmatpush1.bf16.msra.mxu0 %v402
      %481 = vmatprep.subr.bf16.mxu0 0
      %482 = vmatpush1.bf16.msra.mxu0 %v430
      %483 = vmatprep.subr.bf16.mxu0 0
      %484 = vmatpush1.bf16.msra.mxu0 0
      %485 = vmatprep.subr.bf16.mxu0 0
      %486 = vmatpush1.bf16.msra.mxu0 0
      %487 = vmatprep.subr.bf16.mxu0 0
      %488 = vmatpush1.bf16.msra.mxu0 0
      %489 = vmatprep.subr.bf16.mxu0 0
      %490 = vmatpush1.bf16.msra.mxu0 0
      %491 = vmatprep.subr.bf16.mxu0 0
      %492 = vmatpush1.bf16.msra.mxu0 0
      %493 = vmatprep.subr.bf16.mxu0 0
      %494 = vmatpush1.bf16.msra.mxu0 0
      %495 = vmatprep.subr.bf16.mxu0 0
      %496 = vmatpush1.bf16.msra.mxu0 0
      %497 = vmatprep.subr.bf16.mxu0 0
      %498 = vmatpush1.bf16.msra.mxu0 0
      %499 = vmatprep.subr.bf16.mxu0 0
      %500 = vmatpush1.bf16.msra.mxu0 0
      %501 = vmatprep.subr.bf16.mxu0 0
      %502 = vmatpush1.bf16.msra.mxu0 0
      %503 = vmatprep.subr.bf16.mxu0 0
      %504 = vmatpush1.bf16.msra.mxu0 0
      %505 = vmatprep.mubr.bf16.mxu0 0
      %506 = vmatmul.mubr.bf16.gmra.mrb[0].mxu0 %v420
      %v507 = vpop.f32.mrb[0].mxu0
      %v508 = vadd.f32 %v344, %v507
      %v509 = vpop.f32.mrb[0].mxu0
      %v510 = vpop.f32.mrb[0].mxu0
      %v511 = vpop.f32.mrb[0].mxu0
      %512 = vdwg.mxu0
      %v513 = vmax.f32 %v467, 0.0
      %v514 = vmax.f32 %v469, 0.0
      %v515 = vmax.f32 %v508, 0.0
      %516 = vst [vmem:[%s170] sm:$0xff] %v513
      %517 = vst [vmem:[%s170 + $0x8] sm:$0xff] %v514
      %518 = vst [vmem:[%s170 + $0x10] sm:$0xff] %v515
      %p519 = scmp.lt.s32.totalorder %s14, 1
      %s520 = scalar_select %p519, %s14, 1
      %s521 = smul.addr %s520, 3
      %s522 = smul.addr %s521, 8
      %s523 = scalar_lea.vmem %s3, %s522
      // Predicated region
      $region33: #{conv3x3_relu_pallas.1} parent=31 // pred_check
        %p524 = pneg %p100
      $region34: #{conv3x3_relu_pallas.1} parent=31 // pred_check_branch
        %526 = sbr.rel (%p524) target = $region36
      $region35: #{conv3x3_relu_pallas.1} parent=31 // pred_region
        _
      $region36: #{conv3x3_relu_pallas.1} parent=31 // pred_fallthru
        _
    $region32: #{conv3x3_relu_pallas.1} parent=5 // pred_fallthru
      _
    %p527 = scmp.le.s32.totalorder 2, %s9
    // Predicated region
    $region37: #{conv3x3_relu_pallas.1} parent=5 // pred_check
      %p528 = pneg %p527
    $region38: #{conv3x3_relu_pallas.1} parent=5 // pred_check_branch
      %530 = sbr.rel (%p528) target = $region40
    $region39: #{conv3x3_relu_pallas.1} parent=5 // pred_region
      %s531 = ssub.s32 %s9, 2
      // Predicated region
      $region41: #{conv3x3_relu_pallas.1} parent=39 // pred_check
        %p532 = pneg %p106
      $region42: #{conv3x3_relu_pallas.1} parent=39 // pred_check_branch
        %534 = sbr.rel (%p532) target = $region44
      $region43: #{conv3x3_relu_pallas.1} parent=39 // pred_region
        %p535 = scmp.lt.s32.totalorder %s15, 1
        %s536 = scalar_select %p535, %s15, 1
        %s537 = smul.addr %s536, 3
        %s538 = smul.addr %s537, 8
        %s539 = scalar_lea.vmem %s3, %s538
      $region44: #{conv3x3_relu_pallas.1} parent=39 // pred_fallthru
        _
    $region40: #{conv3x3_relu_pallas.1} parent=5 // pred_fallthru
      _
  $region6: #{conv3x3_relu_pallas.1} parent=0 // loop_footer
    %s13 = sadd.s32 1, %s9
  $region7: #{conv3x3_relu_pallas.1} parent=0 // loop_footer_branch
    %8 = sbr.rel target = $region3
  $region8: #{conv3x3_relu_pallas.1} parent=0 // loop_exit
    _

</llo_original>
